<compile_context>
chip_gen: v5e
topology: v5e:2x2
jax: 0.10.0
libtpu: 0.0.40
codegen_flags: <defaults>
</compile_context>

<pallas_src>
import math

import jax
import jax.numpy as jnp
from jax.experimental import pallas as pl
from jax.experimental.pallas import tpu as pltpu


def _layer_norm_f32(z, gamma, beta, eps=1e-5):
    mu = jnp.mean(z, axis=-1, keepdims=True)
    var = jnp.mean((z - mu) ** 2, axis=-1, keepdims=True)
    return (z - mu) * jax.lax.rsqrt(var + eps) * gamma + beta


def _make_kernel(bt, seq, d_model, nhead, dim_ff):
    hd = d_model // nhead
    rows = bt * seq          # rows of work per grid step

    def kernel(x_ref,                      # (bt, S, D)  f32
               wqkv_ref, bqkv_ref,         # (D, 3D) bf16 (q-block pre-scaled), (1, 3D) f32
               wo_ref, bo_ref,             # (D, D)  bf16, (1, D) f32
               ln1_g_ref, ln1_b_ref,       # (1, D) f32
               w1_ref, b1_ref,             # (D, F)  bf16, (1, F) f32
               w2_ref, b2_ref,             # (F, D)  bf16, (1, D) f32
               ln2_g_ref, ln2_b_ref,       # (1, D) f32
               o_ref):                     # (bt, S, D)
        # Flatten the batch tile to (rows, D): large-M matmuls, dense stores.
        x = x_ref[...].reshape(rows, d_model)            # f32 residual copy
        xb = x.astype(jnp.bfloat16)

        # ---- fused q/k/v in-projection: one big bf16 MXU matmul, f32 accumulate ----
        qkv = jnp.dot(xb, wqkv_ref[...],
                      preferred_element_type=jnp.float32) + bqkv_ref[0]   # (rows, 3D)

        # Split into per-batch-element 3D views (leading-dim split only; lane dim kept).
        q = qkv[:, :d_model].reshape(bt, seq, d_model)        # scale already folded in
        k = qkv[:, d_model:2 * d_model].reshape(bt, seq, d_model)
        v = qkv[:, 2 * d_model:].reshape(bt, seq, d_model)

        wo = wo_ref[...]                                      # (D, D) bf16, resident

        # ---- attention: heads statically unrolled, each batched over the batch tile;
        #      head merge folded into the output projection (no lane concatenate). ----
        attn_acc = jnp.zeros((rows, d_model), jnp.float32)
        for h in range(nhead):
            sl = slice(h * hd, (h + 1) * hd)
            qh = q[:, :, sl].astype(jnp.bfloat16)             # (bt, S, hd)
            kh = k[:, :, sl].astype(jnp.bfloat16)
            vh = v[:, :, sl].astype(jnp.bfloat16)

            s = jnp.einsum("bqd,bkd->bqk", qh, kh,
                           preferred_element_type=jnp.float32)           # (bt, S, S) f32
            s = s - jnp.max(s, axis=-1, keepdims=True)                   # f32 stats
            p = jnp.exp(s)
            p = p * pl.reciprocal(jnp.sum(p, axis=-1, keepdims=True),
                                  approx=True)                           # EUP divide
            ah = jnp.einsum("bqk,bkd->bqd", p.astype(jnp.bfloat16), vh,
                            preferred_element_type=jnp.float32)          # (bt, S, hd)

            # per-head slice of the pre-transposed Wo -> accumulate the out-projection
            attn_acc = attn_acc + jnp.dot(
                ah.reshape(rows, hd).astype(jnp.bfloat16), wo[sl, :],
                preferred_element_type=jnp.float32)                      # (rows, D)

        attn_out = attn_acc + bo_ref[0]

        # ---- residual + LayerNorm1 (f32 epilogue) ----
        x1 = _layer_norm_f32(x + attn_out, ln1_g_ref[0], ln1_b_ref[0])

        # ---- feed-forward (ReLU) + residual + LayerNorm2 ----
        h1 = jnp.dot(x1.astype(jnp.bfloat16), w1_ref[...],
                     preferred_element_type=jnp.float32) + b1_ref[0]
        h1 = jnp.maximum(h1, 0.0)
        ff = jnp.dot(h1.astype(jnp.bfloat16), w2_ref[...],
                     preferred_element_type=jnp.float32) + b2_ref[0]
        x2 = _layer_norm_f32(x1 + ff, ln2_g_ref[0], ln2_b_ref[0])

        o_ref[...] = x2.reshape(bt, seq, d_model).astype(o_ref.dtype)

    return kernel


def _pick_batch_tile(batch, seq, target_rows=256):
    """Largest divisor of `batch` keeping <= target_rows rows per grid step."""
    best = 1
    for cand in range(1, batch + 1):
        if batch % cand == 0 and cand * seq <= target_rows:
            best = cand
    return best


def prepare_params(params, nhead):
    """Host-side weight prep: pre-transpose to (in, out), fold the softmax scale
    into the q block of the in-projection, cast matmul weights to bf16."""
    d_model = params["wo"].shape[0]
    hd = d_model // nhead
    scale = 1.0 / math.sqrt(hd)
    col_scale = jnp.concatenate(
        [jnp.full((d_model,), scale, jnp.float32),
         jnp.ones((2 * d_model,), jnp.float32)])
    wqkv_t = (params["wqkv"] * col_scale[:, None]).T.astype(jnp.bfloat16)   # (D, 3D)
    bqkv_s = (params["bqkv"] * col_scale[None, :]).astype(jnp.float32)      # (1, 3D)
    return {
        "wqkv_t": wqkv_t, "bqkv": bqkv_s,
        "wo_t": params["wo"].T.astype(jnp.bfloat16),     # (D, D)
        "bo": params["bo"].astype(jnp.float32),
        "ln1_g": params["ln1_g"], "ln1_b": params["ln1_b"],
        "w1_t": params["w1"].T.astype(jnp.bfloat16),     # (D, F)
        "b1": params["b1"].astype(jnp.float32),
        "w2_t": params["w2"].T.astype(jnp.bfloat16),     # (F, D)
        "b2": params["b2"].astype(jnp.float32),
        "ln2_g": params["ln2_g"], "ln2_b": params["ln2_b"],
    }


def transformer_encoder_pallas(x, params, *, nhead=4):
    """x: (B, S, D) float32. Returns (B, S, D)."""
    B, S, D = x.shape
    F = params["w1"].shape[0]
    assert D % nhead == 0
    prep = prepare_params(params, nhead)

    bt = _pick_batch_tile(B, S)
    grid = (B // bt,)
    kernel = _make_kernel(bt, S, D, nhead, F)

    weight_order = ["wqkv_t", "bqkv", "wo_t", "bo", "ln1_g", "ln1_b",
                    "w1_t", "b1", "w2_t", "b2", "ln2_g", "ln2_b"]
    weights = [prep[k] for k in weight_order]

    def full2d(a):
        return pl.BlockSpec(a.shape, lambda b: (0, 0))

    # VMEM budget from the actual footprint (weights are grid-invariant; block
    # in/out double-buffered). Capped for v7x's 64 MiB physical VMEM.
    weight_bytes = sum(int(w.size) * w.dtype.itemsize for w in weights)
    block_bytes = 2 * bt * S * D * 4
    vmem_limit = int(min(64 * 1024 * 1024,
                         max(16 * 1024 * 1024, 4 * (weight_bytes + block_bytes))))

    hd = D // nhead
    flops = 2 * B * S * (3 * D * D + D * D + 2 * D * F) + 4 * B * nhead * S * S * hd
    cost = pl.CostEstimate(
        flops=int(flops),
        transcendentals=int(B * nhead * S * S),
        bytes_accessed=int(2 * x.size * x.dtype.itemsize + weight_bytes))

    out = pl.pallas_call(
        kernel,
        out_shape=jax.ShapeDtypeStruct((B, S, D), x.dtype),
        grid_spec=pltpu.PrefetchScalarGridSpec(
            num_scalar_prefetch=0,
            grid=grid,
            in_specs=[pl.BlockSpec((bt, S, D), lambda b: (b, 0, 0))]
                     + [full2d(w) for w in weights],
            out_specs=pl.BlockSpec((bt, S, D), lambda b: (b, 0, 0)),
        ),
        compiler_params=pltpu.CompilerParams(
            dimension_semantics=("parallel",),
            vmem_limit_bytes=vmem_limit),
        cost_estimate=cost,
    )(x, *weights)
    return out


# ----------------------------- references -----------------------------------

def transformer_encoder_ref_f32(x, params, *, nhead=4):
    """Faithful f32 eval-mode PyTorch TransformerEncoderLayer (post-norm)."""
    B, S, D = x.shape
    hd = D // nhead
    scale = 1.0 / math.sqrt(hd)
    qkv = jnp.einsum("bsd,ed->bse", x, params["wqkv"]) + params["bqkv"][0]
    q, k, v = qkv[..., :D], qkv[..., D:2 * D], qkv[..., 2 * D:]
    q = q.reshape(B, S, nhead, hd).transpose(0, 2, 1, 3) * scale
    k = k.reshape(B, S, nhead, hd).transpose(0, 2, 1, 3)
    v = v.reshape(B, S, nhead, hd).transpose(0, 2, 1, 3)
    p = jax.nn.softmax(jnp.einsum("bhqd,bhkd->bhqk", q, k), axis=-1)
    a = jnp.einsum("bhqk,bhkd->bhqd", p, v).transpose(0, 2, 1, 3).reshape(B, S, D)
    a = jnp.einsum("bsd,ed->bse", a, params["wo"]) + params["bo"][0]

    def ln(z, g, b):
        mu = jnp.mean(z, -1, keepdims=True)
        var = jnp.mean((z - mu) ** 2, -1, keepdims=True)
        return (z - mu) * jax.lax.rsqrt(var + 1e-5) * g[0] + b[0]

    x1 = ln(x + a, params["ln1_g"], params["ln1_b"])
    h1 = jnp.maximum(jnp.einsum("bsd,fd->bsf", x1, params["w1"]) + params["b1"][0], 0.0)
    ff = jnp.einsum("bsf,df->bsd", h1, params["w2"]) + params["b2"][0]
    return ln(x1 + ff, params["ln2_g"], params["ln2_b"])


def transformer_encoder_ref_mixed(x, params, *, nhead=4):
    """Pure-JAX reference mirroring the kernel's mixed precision (bf16 matmul
    operands, f32 accumulation/statistics, exact softmax divide)."""
    B, S, D = x.shape
    hd = D // nhead
    prep = prepare_params(params, nhead)
    xf = x.reshape(B * S, D)
    xb = xf.astype(jnp.bfloat16)
    qkv = jnp.dot(xb, prep["wqkv_t"], preferred_element_type=jnp.float32) + prep["bqkv"][0]
    q = qkv[:, :D].reshape(B, S, D)
    k = qkv[:, D:2 * D].reshape(B, S, D)
    v = qkv[:, 2 * D:].reshape(B, S, D)
    wo = prep["wo_t"]
    attn = jnp.zeros((B * S, D), jnp.float32)
    for h in range(nhead):
        sl = slice(h * hd, (h + 1) * hd)
        qh = q[:, :, sl].astype(jnp.bfloat16)
        kh = k[:, :, sl].astype(jnp.bfloat16)
        vh = v[:, :, sl].astype(jnp.bfloat16)
        s = jnp.einsum("bqd,bkd->bqk", qh, kh, preferred_element_type=jnp.float32)
        s = s - jnp.max(s, axis=-1, keepdims=True)
        p = jnp.exp(s)
        p = p / jnp.sum(p, axis=-1, keepdims=True)
        ah = jnp.einsum("bqk,bkd->bqd", p.astype(jnp.bfloat16), vh,
                        preferred_element_type=jnp.float32)
        attn = attn + jnp.dot(ah.reshape(B * S, hd).astype(jnp.bfloat16), wo[sl, :],
                              preferred_element_type=jnp.float32)
    attn = attn + prep["bo"][0]

    def ln(z, g, b):
        mu = jnp.mean(z, -1, keepdims=True)
        var = jnp.mean((z - mu) ** 2, -1, keepdims=True)
        return (z - mu) * jax.lax.rsqrt(var + 1e-5) * g[0] + b[0]

    x1 = ln(xf + attn, prep["ln1_g"], prep["ln1_b"])
    h1 = jnp.maximum(jnp.dot(x1.astype(jnp.bfloat16), prep["w1_t"],
                             preferred_element_type=jnp.float32) + prep["b1"][0], 0.0)
    ff = jnp.dot(h1.astype(jnp.bfloat16), prep["w2_t"],
                 preferred_element_type=jnp.float32) + prep["b2"][0]
    return ln(x1 + ff, prep["ln2_g"], prep["ln2_b"]).reshape(B, S, D)


def init_params(key, d_model, nhead, dim_ff):
    ks = jax.random.split(key, 6)
    u = lambda k, shape, fan: jax.random.uniform(
        k, shape, jnp.float32, -1.0 / math.sqrt(fan), 1.0 / math.sqrt(fan))
    return {
        "wqkv": u(ks[0], (3 * d_model, d_model), d_model),
        "bqkv": jnp.zeros((1, 3 * d_model), jnp.float32),
        "wo":   u(ks[1], (d_model, d_model), d_model),
        "bo":   jnp.zeros((1, d_model), jnp.float32),
        "ln1_g": jnp.ones((1, d_model), jnp.float32),
        "ln1_b": jnp.zeros((1, d_model), jnp.float32),
        "w1":   u(ks[2], (dim_ff, d_model), d_model),
        "b1":   u(ks[3], (1, dim_ff), d_model),
        "w2":   u(ks[4], (d_model, dim_ff), dim_ff),
        "b2":   u(ks[5], (1, d_model), dim_ff),
        "ln2_g": jnp.ones((1, d_model), jnp.float32),
        "ln2_b": jnp.zeros((1, d_model), jnp.float32),
    }


if __name__ == "__main__":
    B, S, D = 2, 8, 32          # batch, seq, d_model
    NHEAD, DIM_FF = 4, 64       # small dim_feedforward for the synthetic test

    key = jax.random.PRNGKey(0)
    kx, kp = jax.random.split(key)
    x = jax.random.normal(kx, (B, S, D), jnp.float32)
    params = init_params(kp, D, NHEAD, DIM_FF)

    out = transformer_encoder_pallas(x, params, nhead=NHEAD)
    out = jax.block_until_ready(out)
    assert out.shape == (B, S, D)

    # Implementation check: same mixed-precision recipe -> tight tolerance.
    ref_mixed = transformer_encoder_ref_mixed(x, params, nhead=NHEAD)
    assert jnp.allclose(out, ref_mixed, rtol=1e-2, atol=1e-2), \
        "mismatch vs mixed-precision JAX reference"

    # Semantics check: full-f32 PyTorch-equivalent math -> bf16-matmul tolerance.
    ref_f32 = transformer_encoder_ref_f32(x, params, nhead=NHEAD)
    assert jnp.allclose(out, ref_f32, rtol=5e-2, atol=5e-2), \
        "mismatch vs f32 JAX reference"

    print("KERNEL_OK")
</pallas_src>

<mosaic_0001>
module attributes {stable_mosaic.version = 11 : i64} {
  func.func @kernel(%arg0: i32, %arg1: memref<2x8x32xf32, #tpu.memory_space<vmem>>, %arg2: memref<32x96xbf16, #tpu.memory_space<vmem>>, %arg3: memref<1x96xf32, #tpu.memory_space<vmem>>, %arg4: memref<32x32xbf16, #tpu.memory_space<vmem>>, %arg5: memref<1x32xf32, #tpu.memory_space<vmem>>, %arg6: memref<1x32xf32, #tpu.memory_space<vmem>>, %arg7: memref<1x32xf32, #tpu.memory_space<vmem>>, %arg8: memref<32x64xbf16, #tpu.memory_space<vmem>>, %arg9: memref<1x64xf32, #tpu.memory_space<vmem>>, %arg10: memref<64x32xbf16, #tpu.memory_space<vmem>>, %arg11: memref<1x32xf32, #tpu.memory_space<vmem>>, %arg12: memref<1x32xf32, #tpu.memory_space<vmem>>, %arg13: memref<1x32xf32, #tpu.memory_space<vmem>>, %arg14: memref<2x8x32xf32, #tpu.memory_space<vmem>>) attributes {dimension_semantics = [#tpu.dimension_semantics<parallel>], iteration_bounds = array<i64: 1>, scalar_prefetch = 0 : i64, scratch_operands = 0 : i64, tpu.core_type = #tpu.core_type<tc>, window_params = [{transform_indices = @transform_0, window_bounds = array<i64: 2, 8, 32>}, {pipeline_mode = #tpu.pipeline_mode<synchronous>, transform_indices = @transform_1, window_bounds = array<i64: 32, 96>}, {pipeline_mode = #tpu.pipeline_mode<synchronous>, transform_indices = @transform_2, window_bounds = array<i64: 1, 96>}, {pipeline_mode = #tpu.pipeline_mode<synchronous>, transform_indices = @transform_3, window_bounds = array<i64: 32, 32>}, {pipeline_mode = #tpu.pipeline_mode<synchronous>, transform_indices = @transform_4, window_bounds = array<i64: 1, 32>}, {pipeline_mode = #tpu.pipeline_mode<synchronous>, transform_indices = @transform_5, window_bounds = array<i64: 1, 32>}, {pipeline_mode = #tpu.pipeline_mode<synchronous>, transform_indices = @transform_6, window_bounds = array<i64: 1, 32>}, {pipeline_mode = #tpu.pipeline_mode<synchronous>, transform_indices = @transform_7, window_bounds = array<i64: 32, 64>}, {pipeline_mode = #tpu.pipeline_mode<synchronous>, transform_indices = @transform_8, window_bounds = array<i64: 1, 64>}, {pipeline_mode = #tpu.pipeline_mode<synchronous>, transform_indices = @transform_9, window_bounds = array<i64: 64, 32>}, {pipeline_mode = #tpu.pipeline_mode<synchronous>, transform_indices = @transform_10, window_bounds = array<i64: 1, 32>}, {pipeline_mode = #tpu.pipeline_mode<synchronous>, transform_indices = @transform_11, window_bounds = array<i64: 1, 32>}, {pipeline_mode = #tpu.pipeline_mode<synchronous>, transform_indices = @transform_12, window_bounds = array<i64: 1, 32>}, {transform_indices = @transform_13, window_bounds = array<i64: 2, 8, 32>}]} {
    %c0 = arith.constant 0 : index
    %c0_0 = arith.constant 0 : index
    %c0_1 = arith.constant 0 : index
    %0 = vector.load %arg1[%c0, %c0_0, %c0_1] : memref<2x8x32xf32, #tpu.memory_space<vmem>>, vector<2x8x32xf32>
    %1 = vector.shape_cast %0 : vector<2x8x32xf32> to vector<16x32xf32>
    %2 = arith.truncf %1 : vector<16x32xf32> to vector<16x32xbf16>
    %c0_2 = arith.constant 0 : index
    %c0_3 = arith.constant 0 : index
    %3 = vector.load %arg2[%c0_2, %c0_3] : memref<32x96xbf16, #tpu.memory_space<vmem>>, vector<32x96xbf16>
    %cst = arith.constant dense<0.000000e+00> : vector<16x96xf32>
    %4 = tpu.matmul %2, %3, %cst {dimension_numbers = #tpu.dot_dimension_numbers<[1], [0], [0], [1], [0, 0, 1, 1], [], []>} : vector<16x32xbf16>, vector<32x96xbf16>, vector<16x96xf32> -> vector<16x96xf32>
    %c0_4 = arith.constant 0 : index
    %c0_5 = arith.constant 0 : index
    %5 = vector.load %arg3[%c0_4, %c0_5] : memref<1x96xf32, #tpu.memory_space<vmem>>, vector<1x96xf32>
    %6 = vector.shape_cast %5 : vector<1x96xf32> to vector<96xf32>
    %7 = vector.shape_cast %6 : vector<96xf32> to vector<1x96xf32>
    %8 = vector.broadcast %7 : vector<1x96xf32> to vector<16x96xf32>
    %9 = arith.addf %4, %8 : vector<16x96xf32>
    %10 = vector.extract_strided_slice %9 {offsets = [0, 0], sizes = [16, 32], strides = [1, 1]} : vector<16x96xf32> to vector<16x32xf32>
    %11 = vector.shape_cast %10 : vector<16x32xf32> to vector<2x8x32xf32>
    %12 = vector.extract_strided_slice %9 {offsets = [0, 32], sizes = [16, 32], strides = [1, 1]} : vector<16x96xf32> to vector<16x32xf32>
    %13 = vector.shape_cast %12 : vector<16x32xf32> to vector<2x8x32xf32>
    %14 = vector.extract_strided_slice %9 {offsets = [0, 64], sizes = [16, 32], strides = [1, 1]} : vector<16x96xf32> to vector<16x32xf32>
    %15 = vector.shape_cast %14 : vector<16x32xf32> to vector<2x8x32xf32>
    %c0_6 = arith.constant 0 : index
    %c0_7 = arith.constant 0 : index
    %16 = vector.load %arg4[%c0_6, %c0_7] : memref<32x32xbf16, #tpu.memory_space<vmem>>, vector<32x32xbf16>
    %cst_8 = arith.constant 0.000000e+00 : f32
    %17 = vector.broadcast %cst_8 : f32 to vector<16x32xf32>
    %18 = vector.extract_strided_slice %11 {offsets = [0, 0, 0], sizes = [2, 8, 8], strides = [1, 1, 1]} : vector<2x8x32xf32> to vector<2x8x8xf32>
    %19 = arith.truncf %18 : vector<2x8x8xf32> to vector<2x8x8xbf16>
    %20 = vector.extract_strided_slice %13 {offsets = [0, 0, 0], sizes = [2, 8, 8], strides = [1, 1, 1]} : vector<2x8x32xf32> to vector<2x8x8xf32>
    %21 = arith.truncf %20 : vector<2x8x8xf32> to vector<2x8x8xbf16>
    %22 = vector.extract_strided_slice %15 {offsets = [0, 0, 0], sizes = [2, 8, 8], strides = [1, 1, 1]} : vector<2x8x32xf32> to vector<2x8x8xf32>
    %23 = arith.truncf %22 : vector<2x8x8xf32> to vector<2x8x8xbf16>
    "tpu.trace_start"() <{level = 10 : i32, message = "bqd,bkd->bqk"}> : () -> ()
    %cst_9 = arith.constant dense<0.000000e+00> : vector<2x8x8xf32>
    %24 = tpu.matmul %19, %21, %cst_9 {dimension_numbers = #tpu.dot_dimension_numbers<[2], [2], [1], [1], [0, 0, 0, 1, 1, 1], [0], [0]>} : vector<2x8x8xbf16>, vector<2x8x8xbf16>, vector<2x8x8xf32> -> vector<2x8x8xf32>
    "tpu.trace_stop"() : () -> ()
    %cst_10 = arith.constant dense<0xFF800000> : vector<2x8xf32>
    %25 = vector.multi_reduction <maximumf>, %24, %cst_10 [2] : vector<2x8x8xf32> to vector<2x8xf32>
    %26 = vector.shape_cast %25 : vector<2x8xf32> to vector<2x8x1xf32>
    %27 = vector.broadcast %26 : vector<2x8x1xf32> to vector<2x8x8xf32>
    %28 = arith.subf %24, %27 : vector<2x8x8xf32>
    %29 = math.exp %28 : vector<2x8x8xf32>
    %cst_11 = arith.constant dense<0.000000e+00> : vector<2x8xf32>
    %30 = vector.multi_reduction <add>, %29, %cst_11 [2] : vector<2x8x8xf32> to vector<2x8xf32>
    %31 = vector.shape_cast %30 : vector<2x8xf32> to vector<2x8x1xf32>
    %32 = tpu.reciprocal %31 {approx = true} : vector<2x8x1xf32> -> vector<2x8x1xf32>
    %33 = vector.broadcast %32 : vector<2x8x1xf32> to vector<2x8x8xf32>
    %34 = arith.mulf %29, %33 : vector<2x8x8xf32>
    %35 = arith.truncf %34 : vector<2x8x8xf32> to vector<2x8x8xbf16>
    "tpu.trace_start"() <{level = 10 : i32, message = "bqk,bkd->bqd"}> : () -> ()
    %cst_12 = arith.constant dense<0.000000e+00> : vector<2x8x8xf32>
    %36 = tpu.matmul %35, %23, %cst_12 {dimension_numbers = #tpu.dot_dimension_numbers<[2], [1], [1], [2], [0, 0, 0, 1, 1, 2], [0], [0]>} : vector<2x8x8xbf16>, vector<2x8x8xbf16>, vector<2x8x8xf32> -> vector<2x8x8xf32>
    "tpu.trace_stop"() : () -> ()
    %37 = vector.shape_cast %36 : vector<2x8x8xf32> to vector<16x8xf32>
    %38 = arith.truncf %37 : vector<16x8xf32> to vector<16x8xbf16>
    %39 = vector.extract_strided_slice %16 {offsets = [0, 0], sizes = [8, 32], strides = [1, 1]} : vector<32x32xbf16> to vector<8x32xbf16>
    %cst_13 = arith.constant dense<0.000000e+00> : vector<16x32xf32>
    %40 = tpu.matmul %38, %39, %cst_13 {dimension_numbers = #tpu.dot_dimension_numbers<[1], [0], [0], [1], [0, 0, 1, 1], [], []>} : vector<16x8xbf16>, vector<8x32xbf16>, vector<16x32xf32> -> vector<16x32xf32>
    %41 = arith.addf %17, %40 : vector<16x32xf32>
    %42 = vector.extract_strided_slice %11 {offsets = [0, 0, 8], sizes = [2, 8, 8], strides = [1, 1, 1]} : vector<2x8x32xf32> to vector<2x8x8xf32>
    %43 = arith.truncf %42 : vector<2x8x8xf32> to vector<2x8x8xbf16>
    %44 = vector.extract_strided_slice %13 {offsets = [0, 0, 8], sizes = [2, 8, 8], strides = [1, 1, 1]} : vector<2x8x32xf32> to vector<2x8x8xf32>
    %45 = arith.truncf %44 : vector<2x8x8xf32> to vector<2x8x8xbf16>
    %46 = vector.extract_strided_slice %15 {offsets = [0, 0, 8], sizes = [2, 8, 8], strides = [1, 1, 1]} : vector<2x8x32xf32> to vector<2x8x8xf32>
    %47 = arith.truncf %46 : vector<2x8x8xf32> to vector<2x8x8xbf16>
    "tpu.trace_start"() <{level = 10 : i32, message = "bqd,bkd->bqk"}> : () -> ()
    %cst_14 = arith.constant dense<0.000000e+00> : vector<2x8x8xf32>
    %48 = tpu.matmul %43, %45, %cst_14 {dimension_numbers = #tpu.dot_dimension_numbers<[2], [2], [1], [1], [0, 0, 0, 1, 1, 1], [0], [0]>} : vector<2x8x8xbf16>, vector<2x8x8xbf16>, vector<2x8x8xf32> -> vector<2x8x8xf32>
    "tpu.trace_stop"() : () -> ()
    %cst_15 = arith.constant dense<0xFF800000> : vector<2x8xf32>
    %49 = vector.multi_reduction <maximumf>, %48, %cst_15 [2] : vector<2x8x8xf32> to vector<2x8xf32>
    %50 = vector.shape_cast %49 : vector<2x8xf32> to vector<2x8x1xf32>
    %51 = vector.broadcast %50 : vector<2x8x1xf32> to vector<2x8x8xf32>
    %52 = arith.subf %48, %51 : vector<2x8x8xf32>
    %53 = math.exp %52 : vector<2x8x8xf32>
    %cst_16 = arith.constant dense<0.000000e+00> : vector<2x8xf32>
    %54 = vector.multi_reduction <add>, %53, %cst_16 [2] : vector<2x8x8xf32> to vector<2x8xf32>
    %55 = vector.shape_cast %54 : vector<2x8xf32> to vector<2x8x1xf32>
    %56 = tpu.reciprocal %55 {approx = true} : vector<2x8x1xf32> -> vector<2x8x1xf32>
    %57 = vector.broadcast %56 : vector<2x8x1xf32> to vector<2x8x8xf32>
    %58 = arith.mulf %53, %57 : vector<2x8x8xf32>
    %59 = arith.truncf %58 : vector<2x8x8xf32> to vector<2x8x8xbf16>
    "tpu.trace_start"() <{level = 10 : i32, message = "bqk,bkd->bqd"}> : () -> ()
    %cst_17 = arith.constant dense<0.000000e+00> : vector<2x8x8xf32>
    %60 = tpu.matmul %59, %47, %cst_17 {dimension_numbers = #tpu.dot_dimension_numbers<[2], [1], [1], [2], [0, 0, 0, 1, 1, 2], [0], [0]>} : vector<2x8x8xbf16>, vector<2x8x8xbf16>, vector<2x8x8xf32> -> vector<2x8x8xf32>
    "tpu.trace_stop"() : () -> ()
    %61 = vector.shape_cast %60 : vector<2x8x8xf32> to vector<16x8xf32>
    %62 = arith.truncf %61 : vector<16x8xf32> to vector<16x8xbf16>
    %63 = vector.extract_strided_slice %16 {offsets = [8, 0], sizes = [8, 32], strides = [1, 1]} : vector<32x32xbf16> to vector<8x32xbf16>
    %cst_18 = arith.constant dense<0.000000e+00> : vector<16x32xf32>
    %64 = tpu.matmul %62, %63, %cst_18 {dimension_numbers = #tpu.dot_dimension_numbers<[1], [0], [0], [1], [0, 0, 1, 1], [], []>} : vector<16x8xbf16>, vector<8x32xbf16>, vector<16x32xf32> -> vector<16x32xf32>
    %65 = arith.addf %41, %64 : vector<16x32xf32>
    %66 = vector.extract_strided_slice %11 {offsets = [0, 0, 16], sizes = [2, 8, 8], strides = [1, 1, 1]} : vector<2x8x32xf32> to vector<2x8x8xf32>
    %67 = arith.truncf %66 : vector<2x8x8xf32> to vector<2x8x8xbf16>
    %68 = vector.extract_strided_slice %13 {offsets = [0, 0, 16], sizes = [2, 8, 8], strides = [1, 1, 1]} : vector<2x8x32xf32> to vector<2x8x8xf32>
    %69 = arith.truncf %68 : vector<2x8x8xf32> to vector<2x8x8xbf16>
    %70 = vector.extract_strided_slice %15 {offsets = [0, 0, 16], sizes = [2, 8, 8], strides = [1, 1, 1]} : vector<2x8x32xf32> to vector<2x8x8xf32>
    %71 = arith.truncf %70 : vector<2x8x8xf32> to vector<2x8x8xbf16>
    "tpu.trace_start"() <{level = 10 : i32, message = "bqd,bkd->bqk"}> : () -> ()
    %cst_19 = arith.constant dense<0.000000e+00> : vector<2x8x8xf32>
    %72 = tpu.matmul %67, %69, %cst_19 {dimension_numbers = #tpu.dot_dimension_numbers<[2], [2], [1], [1], [0, 0, 0, 1, 1, 1], [0], [0]>} : vector<2x8x8xbf16>, vector<2x8x8xbf16>, vector<2x8x8xf32> -> vector<2x8x8xf32>
    "tpu.trace_stop"() : () -> ()
    %cst_20 = arith.constant dense<0xFF800000> : vector<2x8xf32>
    %73 = vector.multi_reduction <maximumf>, %72, %cst_20 [2] : vector<2x8x8xf32> to vector<2x8xf32>
    %74 = vector.shape_cast %73 : vector<2x8xf32> to vector<2x8x1xf32>
    %75 = vector.broadcast %74 : vector<2x8x1xf32> to vector<2x8x8xf32>
    %76 = arith.subf %72, %75 : vector<2x8x8xf32>
    %77 = math.exp %76 : vector<2x8x8xf32>
    %cst_21 = arith.constant dense<0.000000e+00> : vector<2x8xf32>
    %78 = vector.multi_reduction <add>, %77, %cst_21 [2] : vector<2x8x8xf32> to vector<2x8xf32>
    %79 = vector.shape_cast %78 : vector<2x8xf32> to vector<2x8x1xf32>
    %80 = tpu.reciprocal %79 {approx = true} : vector<2x8x1xf32> -> vector<2x8x1xf32>
    %81 = vector.broadcast %80 : vector<2x8x1xf32> to vector<2x8x8xf32>
    %82 = arith.mulf %77, %81 : vector<2x8x8xf32>
    %83 = arith.truncf %82 : vector<2x8x8xf32> to vector<2x8x8xbf16>
    "tpu.trace_start"() <{level = 10 : i32, message = "bqk,bkd->bqd"}> : () -> ()
    %cst_22 = arith.constant dense<0.000000e+00> : vector<2x8x8xf32>
    %84 = tpu.matmul %83, %71, %cst_22 {dimension_numbers = #tpu.dot_dimension_numbers<[2], [1], [1], [2], [0, 0, 0, 1, 1, 2], [0], [0]>} : vector<2x8x8xbf16>, vector<2x8x8xbf16>, vector<2x8x8xf32> -> vector<2x8x8xf32>
    "tpu.trace_stop"() : () -> ()
    %85 = vector.shape_cast %84 : vector<2x8x8xf32> to vector<16x8xf32>
    %86 = arith.truncf %85 : vector<16x8xf32> to vector<16x8xbf16>
    %87 = vector.extract_strided_slice %16 {offsets = [16, 0], sizes = [8, 32], strides = [1, 1]} : vector<32x32xbf16> to vector<8x32xbf16>
    %cst_23 = arith.constant dense<0.000000e+00> : vector<16x32xf32>
    %88 = tpu.matmul %86, %87, %cst_23 {dimension_numbers = #tpu.dot_dimension_numbers<[1], [0], [0], [1], [0, 0, 1, 1], [], []>} : vector<16x8xbf16>, vector<8x32xbf16>, vector<16x32xf32> -> vector<16x32xf32>
    %89 = arith.addf %65, %88 : vector<16x32xf32>
    %90 = vector.extract_strided_slice %11 {offsets = [0, 0, 24], sizes = [2, 8, 8], strides = [1, 1, 1]} : vector<2x8x32xf32> to vector<2x8x8xf32>
    %91 = arith.truncf %90 : vector<2x8x8xf32> to vector<2x8x8xbf16>
    %92 = vector.extract_strided_slice %13 {offsets = [0, 0, 24], sizes = [2, 8, 8], strides = [1, 1, 1]} : vector<2x8x32xf32> to vector<2x8x8xf32>
    %93 = arith.truncf %92 : vector<2x8x8xf32> to vector<2x8x8xbf16>
    %94 = vector.extract_strided_slice %15 {offsets = [0, 0, 24], sizes = [2, 8, 8], strides = [1, 1, 1]} : vector<2x8x32xf32> to vector<2x8x8xf32>
    %95 = arith.truncf %94 : vector<2x8x8xf32> to vector<2x8x8xbf16>
    "tpu.trace_start"() <{level = 10 : i32, message = "bqd,bkd->bqk"}> : () -> ()
    %cst_24 = arith.constant dense<0.000000e+00> : vector<2x8x8xf32>
    %96 = tpu.matmul %91, %93, %cst_24 {dimension_numbers = #tpu.dot_dimension_numbers<[2], [2], [1], [1], [0, 0, 0, 1, 1, 1], [0], [0]>} : vector<2x8x8xbf16>, vector<2x8x8xbf16>, vector<2x8x8xf32> -> vector<2x8x8xf32>
    "tpu.trace_stop"() : () -> ()
    %cst_25 = arith.constant dense<0xFF800000> : vector<2x8xf32>
    %97 = vector.multi_reduction <maximumf>, %96, %cst_25 [2] : vector<2x8x8xf32> to vector<2x8xf32>
    %98 = vector.shape_cast %97 : vector<2x8xf32> to vector<2x8x1xf32>
    %99 = vector.broadcast %98 : vector<2x8x1xf32> to vector<2x8x8xf32>
    %100 = arith.subf %96, %99 : vector<2x8x8xf32>
    %101 = math.exp %100 : vector<2x8x8xf32>
    %cst_26 = arith.constant dense<0.000000e+00> : vector<2x8xf32>
    %102 = vector.multi_reduction <add>, %101, %cst_26 [2] : vector<2x8x8xf32> to vector<2x8xf32>
    %103 = vector.shape_cast %102 : vector<2x8xf32> to vector<2x8x1xf32>
    %104 = tpu.reciprocal %103 {approx = true} : vector<2x8x1xf32> -> vector<2x8x1xf32>
    %105 = vector.broadcast %104 : vector<2x8x1xf32> to vector<2x8x8xf32>
    %106 = arith.mulf %101, %105 : vector<2x8x8xf32>
    %107 = arith.truncf %106 : vector<2x8x8xf32> to vector<2x8x8xbf16>
    "tpu.trace_start"() <{level = 10 : i32, message = "bqk,bkd->bqd"}> : () -> ()
    %cst_27 = arith.constant dense<0.000000e+00> : vector<2x8x8xf32>
    %108 = tpu.matmul %107, %95, %cst_27 {dimension_numbers = #tpu.dot_dimension_numbers<[2], [1], [1], [2], [0, 0, 0, 1, 1, 2], [0], [0]>} : vector<2x8x8xbf16>, vector<2x8x8xbf16>, vector<2x8x8xf32> -> vector<2x8x8xf32>
    "tpu.trace_stop"() : () -> ()
    %109 = vector.shape_cast %108 : vector<2x8x8xf32> to vector<16x8xf32>
    %110 = arith.truncf %109 : vector<16x8xf32> to vector<16x8xbf16>
    %111 = vector.extract_strided_slice %16 {offsets = [24, 0], sizes = [8, 32], strides = [1, 1]} : vector<32x32xbf16> to vector<8x32xbf16>
    %cst_28 = arith.constant dense<0.000000e+00> : vector<16x32xf32>
    %112 = tpu.matmul %110, %111, %cst_28 {dimension_numbers = #tpu.dot_dimension_numbers<[1], [0], [0], [1], [0, 0, 1, 1], [], []>} : vector<16x8xbf16>, vector<8x32xbf16>, vector<16x32xf32> -> vector<16x32xf32>
    %113 = arith.addf %89, %112 : vector<16x32xf32>
    %c0_29 = arith.constant 0 : index
    %c0_30 = arith.constant 0 : index
    %114 = vector.load %arg5[%c0_29, %c0_30] : memref<1x32xf32, #tpu.memory_space<vmem>>, vector<1x32xf32>
    %115 = vector.shape_cast %114 : vector<1x32xf32> to vector<32xf32>
    %116 = vector.shape_cast %115 : vector<32xf32> to vector<1x32xf32>
    %117 = vector.broadcast %116 : vector<1x32xf32> to vector<16x32xf32>
    %118 = arith.addf %113, %117 : vector<16x32xf32>
    %119 = arith.addf %1, %118 : vector<16x32xf32>
    %c0_31 = arith.constant 0 : index
    %c0_32 = arith.constant 0 : index
    %120 = vector.load %arg6[%c0_31, %c0_32] : memref<1x32xf32, #tpu.memory_space<vmem>>, vector<1x32xf32>
    %121 = vector.shape_cast %120 : vector<1x32xf32> to vector<32xf32>
    %c0_33 = arith.constant 0 : index
    %c0_34 = arith.constant 0 : index
    %122 = vector.load %arg7[%c0_33, %c0_34] : memref<1x32xf32, #tpu.memory_space<vmem>>, vector<1x32xf32>
    %123 = vector.shape_cast %122 : vector<1x32xf32> to vector<32xf32>
    %cst_35 = arith.constant dense<0.000000e+00> : vector<16xf32>
    %124 = vector.multi_reduction <add>, %119, %cst_35 [1] : vector<16x32xf32> to vector<16xf32>
    %125 = vector.shape_cast %124 : vector<16xf32> to vector<16x1xf32>
    %cst_36 = arith.constant 3.200000e+01 : f32
    %126 = vector.broadcast %cst_36 : f32 to vector<16x1xf32>
    %127 = arith.divf %125, %126 : vector<16x1xf32>
    %128 = vector.broadcast %127 : vector<16x1xf32> to vector<16x32xf32>
    %129 = arith.subf %119, %128 : vector<16x32xf32>
    %130 = arith.mulf %129, %129 : vector<16x32xf32>
    %cst_37 = arith.constant dense<0.000000e+00> : vector<16xf32>
    %131 = vector.multi_reduction <add>, %130, %cst_37 [1] : vector<16x32xf32> to vector<16xf32>
    %132 = vector.shape_cast %131 : vector<16xf32> to vector<16x1xf32>
    %cst_38 = arith.constant 3.200000e+01 : f32
    %133 = vector.broadcast %cst_38 : f32 to vector<16x1xf32>
    %134 = arith.divf %132, %133 : vector<16x1xf32>
    %135 = vector.broadcast %127 : vector<16x1xf32> to vector<16x32xf32>
    %136 = arith.subf %119, %135 : vector<16x32xf32>
    %cst_39 = arith.constant 9.99999974E-6 : f32
    %137 = vector.broadcast %cst_39 : f32 to vector<16x1xf32>
    %138 = arith.addf %134, %137 : vector<16x1xf32>
    %139 = math.rsqrt %138 : vector<16x1xf32>
    %140 = vector.broadcast %139 : vector<16x1xf32> to vector<16x32xf32>
    %141 = arith.mulf %136, %140 : vector<16x32xf32>
    %142 = vector.shape_cast %121 : vector<32xf32> to vector<1x32xf32>
    %143 = vector.broadcast %142 : vector<1x32xf32> to vector<16x32xf32>
    %144 = arith.mulf %141, %143 : vector<16x32xf32>
    %145 = vector.shape_cast %123 : vector<32xf32> to vector<1x32xf32>
    %146 = vector.broadcast %145 : vector<1x32xf32> to vector<16x32xf32>
    %147 = arith.addf %144, %146 : vector<16x32xf32>
    %148 = arith.truncf %147 : vector<16x32xf32> to vector<16x32xbf16>
    %c0_40 = arith.constant 0 : index
    %c0_41 = arith.constant 0 : index
    %149 = vector.load %arg8[%c0_40, %c0_41] : memref<32x64xbf16, #tpu.memory_space<vmem>>, vector<32x64xbf16>
    %cst_42 = arith.constant dense<0.000000e+00> : vector<16x64xf32>
    %150 = tpu.matmul %148, %149, %cst_42 {dimension_numbers = #tpu.dot_dimension_numbers<[1], [0], [0], [1], [0, 0, 1, 1], [], []>} : vector<16x32xbf16>, vector<32x64xbf16>, vector<16x64xf32> -> vector<16x64xf32>
    %c0_43 = arith.constant 0 : index
    %c0_44 = arith.constant 0 : index
    %151 = vector.load %arg9[%c0_43, %c0_44] : memref<1x64xf32, #tpu.memory_space<vmem>>, vector<1x64xf32>
    %152 = vector.shape_cast %151 : vector<1x64xf32> to vector<64xf32>
    %153 = vector.shape_cast %152 : vector<64xf32> to vector<1x64xf32>
    %154 = vector.broadcast %153 : vector<1x64xf32> to vector<16x64xf32>
    %155 = arith.addf %150, %154 : vector<16x64xf32>
    %cst_45 = arith.constant 0.000000e+00 : f32
    %156 = vector.broadcast %cst_45 : f32 to vector<16x64xf32>
    %157 = arith.maximumf %155, %156 : vector<16x64xf32>
    %158 = arith.truncf %157 : vector<16x64xf32> to vector<16x64xbf16>
    %c0_46 = arith.constant 0 : index
    %c0_47 = arith.constant 0 : index
    %159 = vector.load %arg10[%c0_46, %c0_47] : memref<64x32xbf16, #tpu.memory_space<vmem>>, vector<64x32xbf16>
    %cst_48 = arith.constant dense<0.000000e+00> : vector<16x32xf32>
    %160 = tpu.matmul %158, %159, %cst_48 {dimension_numbers = #tpu.dot_dimension_numbers<[1], [0], [0], [1], [0, 0, 1, 1], [], []>} : vector<16x64xbf16>, vector<64x32xbf16>, vector<16x32xf32> -> vector<16x32xf32>
    %c0_49 = arith.constant 0 : index
    %c0_50 = arith.constant 0 : index
    %161 = vector.load %arg11[%c0_49, %c0_50] : memref<1x32xf32, #tpu.memory_space<vmem>>, vector<1x32xf32>
    %162 = vector.shape_cast %161 : vector<1x32xf32> to vector<32xf32>
    %163 = vector.shape_cast %162 : vector<32xf32> to vector<1x32xf32>
    %164 = vector.broadcast %163 : vector<1x32xf32> to vector<16x32xf32>
    %165 = arith.addf %160, %164 : vector<16x32xf32>
    %166 = arith.addf %147, %165 : vector<16x32xf32>
    %c0_51 = arith.constant 0 : index
    %c0_52 = arith.constant 0 : index
    %167 = vector.load %arg12[%c0_51, %c0_52] : memref<1x32xf32, #tpu.memory_space<vmem>>, vector<1x32xf32>
    %168 = vector.shape_cast %167 : vector<1x32xf32> to vector<32xf32>
    %c0_53 = arith.constant 0 : index
    %c0_54 = arith.constant 0 : index
    %169 = vector.load %arg13[%c0_53, %c0_54] : memref<1x32xf32, #tpu.memory_space<vmem>>, vector<1x32xf32>
    %170 = vector.shape_cast %169 : vector<1x32xf32> to vector<32xf32>
    %cst_55 = arith.constant dense<0.000000e+00> : vector<16xf32>
    %171 = vector.multi_reduction <add>, %166, %cst_55 [1] : vector<16x32xf32> to vector<16xf32>
    %172 = vector.shape_cast %171 : vector<16xf32> to vector<16x1xf32>
    %cst_56 = arith.constant 3.200000e+01 : f32
    %173 = vector.broadcast %cst_56 : f32 to vector<16x1xf32>
    %174 = arith.divf %172, %173 : vector<16x1xf32>
    %175 = vector.broadcast %174 : vector<16x1xf32> to vector<16x32xf32>
    %176 = arith.subf %166, %175 : vector<16x32xf32>
    %177 = arith.mulf %176, %176 : vector<16x32xf32>
    %cst_57 = arith.constant dense<0.000000e+00> : vector<16xf32>
    %178 = vector.multi_reduction <add>, %177, %cst_57 [1] : vector<16x32xf32> to vector<16xf32>
    %179 = vector.shape_cast %178 : vector<16xf32> to vector<16x1xf32>
    %cst_58 = arith.constant 3.200000e+01 : f32
    %180 = vector.broadcast %cst_58 : f32 to vector<16x1xf32>
    %181 = arith.divf %179, %180 : vector<16x1xf32>
    %182 = vector.broadcast %174 : vector<16x1xf32> to vector<16x32xf32>
    %183 = arith.subf %166, %182 : vector<16x32xf32>
    %cst_59 = arith.constant 9.99999974E-6 : f32
    %184 = vector.broadcast %cst_59 : f32 to vector<16x1xf32>
    %185 = arith.addf %181, %184 : vector<16x1xf32>
    %186 = math.rsqrt %185 : vector<16x1xf32>
    %187 = vector.broadcast %186 : vector<16x1xf32> to vector<16x32xf32>
    %188 = arith.mulf %183, %187 : vector<16x32xf32>
    %189 = vector.shape_cast %168 : vector<32xf32> to vector<1x32xf32>
    %190 = vector.broadcast %189 : vector<1x32xf32> to vector<16x32xf32>
    %191 = arith.mulf %188, %190 : vector<16x32xf32>
    %192 = vector.shape_cast %170 : vector<32xf32> to vector<1x32xf32>
    %193 = vector.broadcast %192 : vector<1x32xf32> to vector<16x32xf32>
    %194 = arith.addf %191, %193 : vector<16x32xf32>
    %195 = vector.shape_cast %194 : vector<16x32xf32> to vector<2x8x32xf32>
    %c0_60 = arith.constant 0 : index
    %c0_61 = arith.constant 0 : index
    %c0_62 = arith.constant 0 : index
    %196 = vector.load %arg14[%c0_60, %c0_61, %c0_62] : memref<2x8x32xf32, #tpu.memory_space<vmem>>, vector<2x8x32xf32>
    tpu.vector_store %arg14[%c0_60, %c0_61, %c0_62], %195 {strides = array<i32>} : memref<2x8x32xf32, #tpu.memory_space<vmem>>, vector<2x8x32xf32>,
    return
  }
  func.func @transform_0(%arg0: i32) -> (i32, i32, i32) {
    %c0_i32 = arith.constant 0 : i32
    %c0_i32_0 = arith.constant 0 : i32
    %c0_i32_1 = arith.constant 0 : i32
    return %arg0, %c0_i32, %c0_i32_0 : i32, i32, i32
  }
  func.func @transform_1(%arg0: i32) -> (i32, i32) {
    %c0_i32 = arith.constant 0 : i32
    %c0_i32_0 = arith.constant 0 : i32
    %c0_i32_1 = arith.constant 0 : i32
    return %c0_i32, %c0_i32_0 : i32, i32
  }
  func.func @transform_2(%arg0: i32) -> (i32, i32) {
    %c0_i32 = arith.constant 0 : i32
    %c0_i32_0 = arith.constant 0 : i32
    %c0_i32_1 = arith.constant 0 : i32
    return %c0_i32, %c0_i32_0 : i32, i32
  }
  func.func @transform_3(%arg0: i32) -> (i32, i32) {
    %c0_i32 = arith.constant 0 : i32
    %c0_i32_0 = arith.constant 0 : i32
    %c0_i32_1 = arith.constant 0 : i32
    return %c0_i32, %c0_i32_0 : i32, i32
  }
  func.func @transform_4(%arg0: i32) -> (i32, i32) {
    %c0_i32 = arith.constant 0 : i32
    %c0_i32_0 = arith.constant 0 : i32
    %c0_i32_1 = arith.constant 0 : i32
    return %c0_i32, %c0_i32_0 : i32, i32
  }
  func.func @transform_5(%arg0: i32) -> (i32, i32) {
    %c0_i32 = arith.constant 0 : i32
    %c0_i32_0 = arith.constant 0 : i32
    %c0_i32_1 = arith.constant 0 : i32
    return %c0_i32, %c0_i32_0 : i32, i32
  }
  func.func @transform_6(%arg0: i32) -> (i32, i32) {
    %c0_i32 = arith.constant 0 : i32
    %c0_i32_0 = arith.constant 0 : i32
    %c0_i32_1 = arith.constant 0 : i32
    return %c0_i32, %c0_i32_0 : i32, i32
  }
  func.func @transform_7(%arg0: i32) -> (i32, i32) {
    %c0_i32 = arith.constant 0 : i32
    %c0_i32_0 = arith.constant 0 : i32
    %c0_i32_1 = arith.constant 0 : i32
    return %c0_i32, %c0_i32_0 : i32, i32
  }
  func.func @transform_8(%arg0: i32) -> (i32, i32) {
    %c0_i32 = arith.constant 0 : i32
    %c0_i32_0 = arith.constant 0 : i32
    %c0_i32_1 = arith.constant 0 : i32
    return %c0_i32, %c0_i32_0 : i32, i32
  }
  func.func @transform_9(%arg0: i32) -> (i32, i32) {
    %c0_i32 = arith.constant 0 : i32
    %c0_i32_0 = arith.constant 0 : i32
    %c0_i32_1 = arith.constant 0 : i32
    return %c0_i32, %c0_i32_0 : i32, i32
  }
  func.func @transform_10(%arg0: i32) -> (i32, i32) {
    %c0_i32 = arith.constant 0 : i32
    %c0_i32_0 = arith.constant 0 : i32
    %c0_i32_1 = arith.constant 0 : i32
    return %c0_i32, %c0_i32_0 : i32, i32
  }
  func.func @transform_11(%arg0: i32) -> (i32, i32) {
    %c0_i32 = arith.constant 0 : i32
    %c0_i32_0 = arith.constant 0 : i32
    %c0_i32_1 = arith.constant 0 : i32
    return %c0_i32, %c0_i32_0 : i32, i32
  }
  func.func @transform_12(%arg0: i32) -> (i32, i32) {
    %c0_i32 = arith.constant 0 : i32
    %c0_i32_0 = arith.constant 0 : i32
    %c0_i32_1 = arith.constant 0 : i32
    return %c0_i32, %c0_i32_0 : i32, i32
  }
  func.func @transform_13(%arg0: i32) -> (i32, i32, i32) {
    %c0_i32 = arith.constant 0 : i32
    %c0_i32_0 = arith.constant 0 : i32
    %c0_i32_1 = arith.constant 0 : i32
    return %arg0, %c0_i32, %c0_i32_0 : i32, i32, i32
  }
}

</mosaic_0001>

<llo_original>
// kernel: tpu_custom_call.1
$region0: #{tpu_custom_call.1}
  #allocation0 [shape = 'u32[]', space=smem, size = 0x4, offset = 0x4, fixed_abs, tag = 'smem constant byte address 0x4 - core index']
  #allocation1 [shape = 'u32[72,128]{1,0:T(1,128)}', space=vmem, size = 0x9000, scoped, tag = 'internal scratch']
  %s0 = inlined_call_operand.vmem [shape: f32[2,8,32], index: 0, kind: input, shape index: {}]
  %s1 = inlined_call_operand.vmem [shape: bf16[32,96], index: 1, kind: input, shape index: {}]
  %s2 = inlined_call_operand.vmem [shape: f32[1,96], index: 2, kind: input, shape index: {}]
  %s3 = inlined_call_operand.vmem [shape: bf16[32,32], index: 3, kind: input, shape index: {}]
  %s4 = inlined_call_operand.vmem [shape: f32[1,32], index: 4, kind: input, shape index: {}]
  %s5 = inlined_call_operand.vmem [shape: f32[1,32], index: 5, kind: input, shape index: {}]
  %s6 = inlined_call_operand.vmem [shape: f32[1,32], index: 6, kind: input, shape index: {}]
  %s7 = inlined_call_operand.hbm [shape: bf16[32,64], index: 7, kind: input, shape index: {}]
  %s8 = inlined_call_operand.vmem [shape: f32[1,64], index: 8, kind: input, shape index: {}]
  %s9 = inlined_call_operand.vmem [shape: bf16[64,32], index: 9, kind: input, shape index: {}]
  %s10 = inlined_call_operand.vmem [shape: f32[1,32], index: 10, kind: input, shape index: {}]
  %s11 = inlined_call_operand.vmem [shape: f32[1,32], index: 11, kind: input, shape index: {}]
  %s12 = inlined_call_operand.vmem [shape: f32[1,32], index: 12, kind: input, shape index: {}]
  %s13 = inlined_call_operand.hbm [shape: f32[2,8,32], index: 13, kind: output, shape index: {}]
  %s14 = sld [smem:[#allocation0]]
  $region66: #{tpu_custom_call.1} parent=0
    _
  %s16 = ssub.s32 1, %s14
  %s17 = scalar_select 0, %s16, %s14
  $region1: #{tpu_custom_call.1} parent=0
    #allocation2 [shape = 'u8[8192]{0}', space=vmem, size = 0x2000, scoped, tag = 'input window, operand 7, single buffered']
    #allocation3 [shape = 's32[1]{0}', space=sflag, size = 0x4, scoped, tag = 'scoped memory for tpu_custom_call.1']
    #allocation4 [shape = 's32[1]{0}', space=sflag, size = 0x4, scoped, tag = 'scoped memory for tpu_custom_call.1']
    #allocation5 [shape = 'u8[8192]{0}', space=vmem, size = 0x2000, scoped, tag = 'output window, operand 0, single buffered']
    %18 = vsyncpa [#allocation3], 0
    %19 = vsyncpa [#allocation4], 0
    // Predicated region
    $region2: #{tpu_custom_call.1} parent=1 // pred_check
      _
    $region3: #{tpu_custom_call.1} parent=1 // pred_check_branch
      %21 = sbr.rel (0) target = $region5
    $region4: #{tpu_custom_call.1} parent=1 // pred_region
      _
    $region5: #{tpu_custom_call.1} parent=1 // pred_fallthru
      _
    // Predicated region
    $region6: #{tpu_custom_call.1} parent=1 // pred_check
      _
    $region7: #{tpu_custom_call.1} parent=1 // pred_check_branch
      %23 = sbr.rel (0) target = $region9
    $region8: #{tpu_custom_call.1} parent=1 // pred_region
      _
    $region9: #{tpu_custom_call.1} parent=1 // pred_fallthru
      _
    // Predicated region
    $region10: #{tpu_custom_call.1} parent=1 // pred_check
      _
    $region11: #{tpu_custom_call.1} parent=1 // pred_check_branch
      %25 = sbr.rel (0) target = $region13
    $region12: #{tpu_custom_call.1} parent=1 // pred_region
      _
    $region13: #{tpu_custom_call.1} parent=1 // pred_fallthru
      _
    // Predicated region
    $region14: #{tpu_custom_call.1} parent=1 // pred_check
      _
    $region15: #{tpu_custom_call.1} parent=1 // pred_check_branch
      %27 = sbr.rel (0) target = $region17
    $region16: #{tpu_custom_call.1} parent=1 // pred_region
      _
    $region17: #{tpu_custom_call.1} parent=1 // pred_fallthru
      _
    // Predicated region
    $region18: #{tpu_custom_call.1} parent=1 // pred_check
      _
    $region19: #{tpu_custom_call.1} parent=1 // pred_check_branch
      %29 = sbr.rel (0) target = $region21
    $region20: #{tpu_custom_call.1} parent=1 // pred_region
      _
    $region21: #{tpu_custom_call.1} parent=1 // pred_fallthru
      _
    // Predicated region
    $region22: #{tpu_custom_call.1} parent=1 // pred_check
      _
    $region23: #{tpu_custom_call.1} parent=1 // pred_check_branch
      %31 = sbr.rel (0) target = $region25
    $region24: #{tpu_custom_call.1} parent=1 // pred_region
      _
    $region25: #{tpu_custom_call.1} parent=1 // pred_fallthru
      _
    // Predicated region
    $region26: #{tpu_custom_call.1} parent=1 // pred_check
      _
    $region27: #{tpu_custom_call.1} parent=1 // pred_check_branch
      %33 = sbr.rel (0) target = $region29
    $region28: #{tpu_custom_call.1} parent=1 // pred_region
      _
    $region29: #{tpu_custom_call.1} parent=1 // pred_fallthru
      _
    // Predicated region
    $region30: #{tpu_custom_call.1} parent=1 // pred_check
      _
    $region31: #{tpu_custom_call.1} parent=1 // pred_check_branch
      %35 = sbr.rel (0) target = $region33
    $region32: #{tpu_custom_call.1} parent=1 // pred_region
      %37 = vsyncadd [#allocation3], 0
      %s38 = sshll.u32 %s7, 4
      %s39 = int_to_ptr.hbm [resolvable:$true] %s38
      %s40 = sshll.u32 [#allocation2], 4
      %s41 = int_to_ptr.vmem [resolvable:$true] %s40
      %46 = dma.hbm_to_vmem [thread:$0]  %s39, 256, %s41, [#allocation3], 64, 64, 4
    $region33: #{tpu_custom_call.1} parent=1 // pred_fallthru
      _
    // Predicated region
    $region34: #{tpu_custom_call.1} parent=1 // pred_check
      _
    $region35: #{tpu_custom_call.1} parent=1 // pred_check_branch
      %48 = sbr.rel (0) target = $region37
    $region36: #{tpu_custom_call.1} parent=1 // pred_region
      _
    $region37: #{tpu_custom_call.1} parent=1 // pred_fallthru
      _
    // Predicated region
    $region38: #{tpu_custom_call.1} parent=1 // pred_check
      _
    $region39: #{tpu_custom_call.1} parent=1 // pred_check_branch
      %50 = sbr.rel (0) target = $region41
    $region40: #{tpu_custom_call.1} parent=1 // pred_region
      _
    $region41: #{tpu_custom_call.1} parent=1 // pred_fallthru
      _
    // Predicated region
    $region42: #{tpu_custom_call.1} parent=1 // pred_check
      _
    $region43: #{tpu_custom_call.1} parent=1 // pred_check_branch
      %52 = sbr.rel (0) target = $region45
    $region44: #{tpu_custom_call.1} parent=1 // pred_region
      _
    $region45: #{tpu_custom_call.1} parent=1 // pred_fallthru
      _
    // Predicated region
    $region46: #{tpu_custom_call.1} parent=1 // pred_check
      _
    $region47: #{tpu_custom_call.1} parent=1 // pred_check_branch
      %54 = sbr.rel (0) target = $region49
    $region48: #{tpu_custom_call.1} parent=1 // pred_region
      _
    $region49: #{tpu_custom_call.1} parent=1 // pred_fallthru
      _
    // Predicated region
    $region50: #{tpu_custom_call.1} parent=1 // pred_check
      _
    $region51: #{tpu_custom_call.1} parent=1 // pred_check_branch
      %56 = sbr.rel (0) target = $region53
    $region52: #{tpu_custom_call.1} parent=1 // pred_region
      _
    $region53: #{tpu_custom_call.1} parent=1 // pred_fallthru
      _
    // Predicated region
    $region54: #{tpu_custom_call.1} parent=1 // pred_check
      _
    $region55: #{tpu_custom_call.1} parent=1 // pred_check_branch
      %58 = sbr.rel (0) target = $region57
    $region56: #{tpu_custom_call.1} parent=1 // pred_region
      %60 = dma.done [#allocation3], 256
    $region57: #{tpu_custom_call.1} parent=1 // pred_fallthru
      _
    %v62 = vld [vmem:[%s0] sm:$0xff]
    %v63 = vld [vmem:[%s0 + $0x8] sm:$0xff]
    %v64 = vpack.c.bf16 %v63, %v62
    %v65 = vld [vmem:[%s1] sm:$0xf]
    %v66 = vld [vmem:[%s1 + $0x4] sm:$0xf]
    %v67 = vld [vmem:[%s1 + $0x8] sm:$0xf]
    %v68 = vld [vmem:[%s1 + $0xc] sm:$0xf]
    %v69 = vld [vmem:[%s2] sm:$0x1]
    %v71 = vperm.slane %v69, 0
    %v77 = vunpack.c.l.b16 %v65
    %v78 = vunpack.c.l.b16 %v66
    %v79 = vunpack.c.l.b16 %v67
    %v80 = vunpack.c.l.b16 %v68
    %v81 = vpack.c.b16 %v78, %v77
    %v82 = vpack.c.b16 %v80, %v79
    %vm85 = vcmask 261120
    %v87 = vsel %vm85, %v64, 0
    %89 = vmatpush.bf16.msra.mxu0 0
    %90 = vmatpush.bf16.msra.mxu0 0
    %91 = vmatpush.bf16.msra.mxu0 0
    %92 = vmatpush.bf16.msra.mxu0 0
    %93 = vmatpush.bf16.msra.mxu0 0
    %94 = vmatpush.bf16.msra.mxu0 0
    %95 = vmatpush.bf16.msra.mxu0 %v82
    %96 = vmatpush.bf16.msra.mxu0 %v81
    %97 = vmatmul.bf16.gmra.mxu0 %v87
    %v98 = vpop.f32.mrf.mxu0
    %v99 = vadd.f32 %v71, %v98
    %v100 = vpop.f32.mrf.mxu0
    %v101 = vadd.f32 %v71, %v100
    %102 = vdwg.mxu0
    %v103 = vld [vmem:[%s3] sm:$0xf]
    %v104 = vld [vmem:[%s3 + $0x4] sm:$0xf]
    %v105 = vld [vmem:[%s3 + $0x8] sm:$0xf]
    %v106 = vld [vmem:[%s3 + $0xc] sm:$0xf]
    %v107 = vpack.c.bf16 %v99, %v99
    %v108 = vpack.c.bf16 %v101, %v101
    %v110 = vunpack.c.l.b16 %v107
    %v111 = vpack.c.b16 %v110, %v110
    %112 = vrot.lane.b32.xlu0 %v111, 96
    %v113 = vpop.permute.xlu0 %112
    %vm114 = vcmask 64512
    %v116 = vsel %vm114, %v107, 0
    %v119 = vsel %vm114, %v113, 0
    %121 = vmatpush.bf16.xpose.msra.mxu0 0
    %122 = vmatpush.bf16.xpose.msra.mxu0 0
    %123 = vmatpush.bf16.xpose.msra.mxu0 0
    %124 = vmatpush.bf16.xpose.msra.mxu0 0
    %125 = vmatpush.bf16.xpose.msra.mxu0 0
    %126 = vmatpush.bf16.xpose.msra.mxu0 0
    %127 = vmatpush.bf16.xpose.msra.mxu0 0
    %128 = vmatpush.bf16.xpose.msra.mxu0 %v119
    %129 = vmatmul.bf16.gmra.mxu0 %v116
    %v130 = vpop.f32.mrf.mxu0
    %v131 = vadd.f32 0.0, %v130
    %v132 = vpop.f32.mrf.mxu0
    %133 = vdwg.mxu0
    %v135 = vunpack.c.l.b16 %v108
    %v136 = vpack.c.b16 %v135, %v135
    %137 = vrot.lane.b32.xlu0 %v136, 96
    %v138 = vpop.permute.xlu0 %137
    %v140 = vsel %vm114, %v108, 0
    %v143 = vsel %vm114, %v138, 0
    %145 = vmatpush.bf16.xpose.msra.mxu0 0
    %146 = vmatpush.bf16.xpose.msra.mxu0 0
    %147 = vmatpush.bf16.xpose.msra.mxu0 0
    %148 = vmatpush.bf16.xpose.msra.mxu0 0
    %149 = vmatpush.bf16.xpose.msra.mxu0 0
    %150 = vmatpush.bf16.xpose.msra.mxu0 0
    %151 = vmatpush.bf16.xpose.msra.mxu0 0
    %152 = vmatpush.bf16.xpose.msra.mxu0 %v143
    %153 = vmatmul.bf16.gmra.mxu0 %v140
    %v154 = vpop.f32.mrf.mxu0
    %v155 = vadd.f32 0.0, %v154
    %v156 = vpop.f32.mrf.mxu0
    %157 = vdwg.mxu0
    %v158 = vsel %vm114, %v131, -inf
    %159 = vmax.xlane.f32.xlu0 %v158
    %v160 = vpop.xlane.xlu0 %159
    %v161 = vsel %vm114, %v155, -inf
    %162 = vmax.xlane.f32.xlu0 %v161
    %v163 = vpop.xlane.xlu0 %162
    %v164 = vsub.f32 %v131, %v160
    %v165 = vsub.f32 %v155, %v163
    %v166 = vmul.f32 %v164, 1.442695
    %v167 = vpow.pop %v166
    %v168 = vmul.f32 %v165, 1.442695
    %v169 = vpow.pop %v168
    %v170 = vsel %vm114, %v167, 0.0
    %171 = vadd.xlane.f32.xlu0 %v170
    %v172 = vpop.xlane.xlu0 %171
    %v173 = vsel %vm114, %v169, 0.0
    %174 = vadd.xlane.f32.xlu0 %v173
    %v175 = vpop.xlane.xlu0 %174
    %v176 = vrcp.pop %v172
    %v177 = vrcp.pop %v175
    %v178 = vmul.f32 %v167, %v176
    %v179 = vmul.f32 %v169, %v177
    %v180 = vpack.c.bf16 %v178, %v178
    %v181 = vpack.c.bf16 %v179, %v179
    %182 = vrot.lane.b32.xlu0 %v111, 64
    %v183 = vpop.permute.xlu0 %182
    %v185 = vsel %vm114, %v180, 0
    %vm187 = vcmask 1043456
    %v189 = vsel %vm187, %v183, 0
    %191 = vmatpush.bf16.msra.mxu0 0
    %192 = vmatpush.bf16.msra.mxu0 0
    %193 = vmatpush.bf16.msra.mxu0 0
    %194 = vmatpush.bf16.msra.mxu0 0
    %195 = vmatpush.bf16.msra.mxu0 0
    %196 = vmatpush.bf16.msra.mxu0 0
    %197 = vmatpush.bf16.msra.mxu0 0
    %198 = vmatpush.bf16.msra.mxu0 %v189
    %199 = vmatmul.bf16.gmra.mxu0 %v185
    %v200 = vpop.f32.mrf.mxu0
    %v201 = vadd.f32 0.0, %v200
    %v202 = vpop.f32.mrf.mxu0
    %203 = vdwg.mxu0
    %204 = vrot.lane.b32.xlu0 %v136, 64
    %v205 = vpop.permute.xlu0 %204
    %v207 = vsel %vm114, %v181, 0
    %v210 = vsel %vm187, %v205, 0
    %212 = vmatpush.bf16.msra.mxu0 0
    %213 = vmatpush.bf16.msra.mxu0 0
    %214 = vmatpush.bf16.msra.mxu0 0
    %215 = vmatpush.bf16.msra.mxu0 0
    %216 = vmatpush.bf16.msra.mxu0 0
    %217 = vmatpush.bf16.msra.mxu0 0
    %218 = vmatpush.bf16.msra.mxu0 0
    %219 = vmatpush.bf16.msra.mxu0 %v210
    %220 = vmatmul.bf16.gmra.mxu0 %v207
    %v221 = vpop.f32.mrf.mxu0
    %v222 = vadd.f32 0.0, %v221
    %v223 = vpop.f32.mrf.mxu0
    %224 = vdwg.mxu0
    %v225 = vpack.c.bf16 %v222, %v201
    %226 = vrot.lane.b32.xlu0 %v111, 120
    %v227 = vpop.permute.xlu0 %226
    %228 = vrot.lane.b32.xlu0 %v111, 88
    %v229 = vpop.permute.xlu0 %228
    %v231 = vsel %vm114, %v227, 0
    %v234 = vsel %vm114, %v229, 0
    %236 = vmatpush.bf16.xpose.msra.mxu0 0
    %237 = vmatpush.bf16.xpose.msra.mxu0 0
    %238 = vmatpush.bf16.xpose.msra.mxu0 0
    %239 = vmatpush.bf16.xpose.msra.mxu0 0
    %240 = vmatpush.bf16.xpose.msra.mxu0 0
    %241 = vmatpush.bf16.xpose.msra.mxu0 0
    %242 = vmatpush.bf16.xpose.msra.mxu0 0
    %243 = vmatpush.bf16.xpose.msra.mxu0 %v234
    %244 = vmatmul.bf16.gmra.mxu0 %v231
    %v245 = vpop.f32.mrf.mxu0
    %v246 = vadd.f32 0.0, %v245
    %v247 = vpop.f32.mrf.mxu0
    %248 = vdwg.mxu0
    %249 = vrot.lane.b32.xlu0 %v136, 120
    %v250 = vpop.permute.xlu0 %249
    %251 = vrot.lane.b32.xlu0 %v136, 88
    %v252 = vpop.permute.xlu0 %251
    %v254 = vsel %vm114, %v250, 0
    %v257 = vsel %vm114, %v252, 0
    %259 = vmatpush.bf16.xpose.msra.mxu0 0
    %260 = vmatpush.bf16.xpose.msra.mxu0 0
    %261 = vmatpush.bf16.xpose.msra.mxu0 0
    %262 = vmatpush.bf16.xpose.msra.mxu0 0
    %263 = vmatpush.bf16.xpose.msra.mxu0 0
    %264 = vmatpush.bf16.xpose.msra.mxu0 0
    %265 = vmatpush.bf16.xpose.msra.mxu0 0
    %266 = vmatpush.bf16.xpose.msra.mxu0 %v257
    %267 = vmatmul.bf16.gmra.mxu0 %v254
    %v268 = vpop.f32.mrf.mxu0
    %v269 = vadd.f32 0.0, %v268
    %v270 = vpop.f32.mrf.mxu0
    %271 = vdwg.mxu0
    %v272 = vsel %vm114, %v246, -inf
    %273 = vmax.xlane.f32.xlu0 %v272
    %v274 = vpop.xlane.xlu0 %273
    %v275 = vsel %vm114, %v269, -inf
    %276 = vmax.xlane.f32.xlu0 %v275
    %v277 = vpop.xlane.xlu0 %276
    %v278 = vsub.f32 %v246, %v274
    %v279 = vsub.f32 %v269, %v277
    %v280 = vmul.f32 %v278, 1.442695
    %v281 = vpow.pop %v280
    %v282 = vmul.f32 %v279, 1.442695
    %v283 = vpow.pop %v282
    %v284 = vsel %vm114, %v281, 0.0
    %285 = vadd.xlane.f32.xlu0 %v284
    %v286 = vpop.xlane.xlu0 %285
    %v287 = vsel %vm114, %v283, 0.0
    %288 = vadd.xlane.f32.xlu0 %v287
    %v289 = vpop.xlane.xlu0 %288
    %v290 = vrcp.pop %v286
    %v291 = vrcp.pop %v289
    %v292 = vmul.f32 %v281, %v290
    %v293 = vmul.f32 %v283, %v291
    %v294 = vpack.c.bf16 %v292, %v292
    %v295 = vpack.c.bf16 %v293, %v293
    %296 = vrot.lane.b32.xlu0 %v111, 56
    %v297 = vpop.permute.xlu0 %296
    %v299 = vsel %vm114, %v294, 0
    %v302 = vsel %vm187, %v297, 0
    %304 = vmatpush.bf16.msra.mxu0 0
    %305 = vmatpush.bf16.msra.mxu0 0
    %306 = vmatpush.bf16.msra.mxu0 0
    %307 = vmatpush.bf16.msra.mxu0 0
    %308 = vmatpush.bf16.msra.mxu0 0
    %309 = vmatpush.bf16.msra.mxu0 0
    %310 = vmatpush.bf16.msra.mxu0 0
    %311 = vmatpush.bf16.msra.mxu0 %v302
    %312 = vmatmul.bf16.gmra.mxu0 %v299
    %v313 = vpop.f32.mrf.mxu0
    %v314 = vadd.f32 0.0, %v313
    %v315 = vpop.f32.mrf.mxu0
    %316 = vdwg.mxu0
    %317 = vrot.lane.b32.xlu0 %v136, 56
    %v318 = vpop.permute.xlu0 %317
    %v320 = vsel %vm114, %v295, 0
    %v323 = vsel %vm187, %v318, 0
    %325 = vmatpush.bf16.msra.mxu0 0
    %326 = vmatpush.bf16.msra.mxu0 0
    %327 = vmatpush.bf16.msra.mxu0 0
    %328 = vmatpush.bf16.msra.mxu0 0
    %329 = vmatpush.bf16.msra.mxu0 0
    %330 = vmatpush.bf16.msra.mxu0 0
    %331 = vmatpush.bf16.msra.mxu0 0
    %332 = vmatpush.bf16.msra.mxu0 %v323
    %333 = vmatmul.bf16.gmra.mxu0 %v320
    %v334 = vpop.f32.mrf.mxu0
    %v335 = vadd.f32 0.0, %v334
    %v336 = vpop.f32.mrf.mxu0
    %337 = vdwg.mxu0
    %v338 = vpack.c.bf16 %v335, %v314
    %v340 = vsel %vm114, %v338, 0
    %v343 = vsel %vm187, %v104, 0
    %345 = vmatpush.bf16.msra.mxu0 0
    %346 = vmatpush.bf16.msra.mxu0 0
    %347 = vmatpush.bf16.msra.mxu0 0
    %348 = vmatpush.bf16.msra.mxu0 0
    %349 = vmatpush.bf16.msra.mxu0 0
    %350 = vmatpush.bf16.msra.mxu0 0
    %351 = vmatpush.bf16.msra.mxu0 0
    %352 = vmatpush.bf16.msra.mxu0 %v343
    %353 = vmatmul.bf16.gmra.mxu0 %v340
    %v354 = vpop.f32.mrf.mxu0
    %v355 = vadd.f32 0.0, %v354
    %v356 = vpop.f32.mrf.mxu0
    %v357 = vadd.f32 0.0, %v356
    %358 = vdwg.mxu0
    %v360 = vsel %vm114, %v225, 0
    %v363 = vsel %vm187, %v103, 0
    %365 = vmatpush.bf16.msra.mxu0 0
    %366 = vmatpush.bf16.msra.mxu0 0
    %367 = vmatpush.bf16.msra.mxu0 0
    %368 = vmatpush.bf16.msra.mxu0 0
    %369 = vmatpush.bf16.msra.mxu0 0
    %370 = vmatpush.bf16.msra.mxu0 0
    %371 = vmatpush.bf16.msra.mxu0 0
    %372 = vmatpush.bf16.msra.mxu0 %v363
    %373 = vmatmul.bf16.gmra.mxu0 %v360
    %v374 = vpop.f32.mrf.mxu0
    %v375 = vadd.f32 %v355, %v374
    %v376 = vpop.f32.mrf.mxu0
    %v377 = vadd.f32 %v357, %v376
    %378 = vdwg.mxu0
    %379 = vrot.lane.b32.xlu0 %v111, 112
    %v380 = vpop.permute.xlu0 %379
    %381 = vrot.lane.b32.xlu0 %v111, 80
    %v382 = vpop.permute.xlu0 %381
    %v384 = vsel %vm114, %v380, 0
    %v387 = vsel %vm114, %v382, 0
    %389 = vmatpush.bf16.xpose.msra.mxu0 0
    %390 = vmatpush.bf16.xpose.msra.mxu0 0
    %391 = vmatpush.bf16.xpose.msra.mxu0 0
    %392 = vmatpush.bf16.xpose.msra.mxu0 0
    %393 = vmatpush.bf16.xpose.msra.mxu0 0
    %394 = vmatpush.bf16.xpose.msra.mxu0 0
    %395 = vmatpush.bf16.xpose.msra.mxu0 0
    %396 = vmatpush.bf16.xpose.msra.mxu0 %v387
    %397 = vmatmul.bf16.gmra.mxu0 %v384
    %v398 = vpop.f32.mrf.mxu0
    %v399 = vadd.f32 0.0, %v398
    %v400 = vpop.f32.mrf.mxu0
    %401 = vdwg.mxu0
    %402 = vrot.lane.b32.xlu0 %v136, 112
    %v403 = vpop.permute.xlu0 %402
    %404 = vrot.lane.b32.xlu0 %v136, 80
    %v405 = vpop.permute.xlu0 %404
    %v407 = vsel %vm114, %v403, 0
    %v410 = vsel %vm114, %v405, 0
    %412 = vmatpush.bf16.xpose.msra.mxu0 0
    %413 = vmatpush.bf16.xpose.msra.mxu0 0
    %414 = vmatpush.bf16.xpose.msra.mxu0 0
    %415 = vmatpush.bf16.xpose.msra.mxu0 0
    %416 = vmatpush.bf16.xpose.msra.mxu0 0
    %417 = vmatpush.bf16.xpose.msra.mxu0 0
    %418 = vmatpush.bf16.xpose.msra.mxu0 0
    %419 = vmatpush.bf16.xpose.msra.mxu0 %v410
    %420 = vmatmul.bf16.gmra.mxu0 %v407
    %v421 = vpop.f32.mrf.mxu0
    %v422 = vadd.f32 0.0, %v421
    %v423 = vpop.f32.mrf.mxu0
    %424 = vdwg.mxu0
    %v425 = vsel %vm114, %v399, -inf
    %426 = vmax.xlane.f32.xlu0 %v425
    %v427 = vpop.xlane.xlu0 %426
    %v428 = vsel %vm114, %v422, -inf
    %429 = vmax.xlane.f32.xlu0 %v428
    %v430 = vpop.xlane.xlu0 %429
    %v431 = vsub.f32 %v399, %v427
    %v432 = vsub.f32 %v422, %v430
    %v433 = vmul.f32 %v431, 1.442695
    %v434 = vpow.pop %v433
    %v435 = vmul.f32 %v432, 1.442695
    %v436 = vpow.pop %v435
    %v437 = vsel %vm114, %v434, 0.0
    %438 = vadd.xlane.f32.xlu0 %v437
    %v439 = vpop.xlane.xlu0 %438
    %v440 = vsel %vm114, %v436, 0.0
    %441 = vadd.xlane.f32.xlu0 %v440
    %v442 = vpop.xlane.xlu0 %441
    %v443 = vrcp.pop %v439
    %v444 = vrcp.pop %v442
    %v445 = vmul.f32 %v434, %v443
    %v446 = vmul.f32 %v436, %v444
    %v447 = vpack.c.bf16 %v445, %v445
    %v448 = vpack.c.bf16 %v446, %v446
    %449 = vrot.lane.b32.xlu0 %v111, 48
    %v450 = vpop.permute.xlu0 %449
    %v452 = vsel %vm114, %v447, 0
    %v455 = vsel %vm187, %v450, 0
    %457 = vmatpush.bf16.msra.mxu0 0
    %458 = vmatpush.bf16.msra.mxu0 0
    %459 = vmatpush.bf16.msra.mxu0 0
    %460 = vmatpush.bf16.msra.mxu0 0
    %461 = vmatpush.bf16.msra.mxu0 0
    %462 = vmatpush.bf16.msra.mxu0 0
    %463 = vmatpush.bf16.msra.mxu0 0
    %464 = vmatpush.bf16.msra.mxu0 %v455
    %465 = vmatmul.bf16.gmra.mxu0 %v452
    %v466 = vpop.f32.mrf.mxu0
    %v467 = vadd.f32 0.0, %v466
    %v468 = vpop.f32.mrf.mxu0
    %469 = vdwg.mxu0
    %470 = vrot.lane.b32.xlu0 %v136, 48
    %v471 = vpop.permute.xlu0 %470
    %v473 = vsel %vm114, %v448, 0
    %v476 = vsel %vm187, %v471, 0
    %478 = vmatpush.bf16.msra.mxu0 0
    %479 = vmatpush.bf16.msra.mxu0 0
    %480 = vmatpush.bf16.msra.mxu0 0
    %481 = vmatpush.bf16.msra.mxu0 0
    %482 = vmatpush.bf16.msra.mxu0 0
    %483 = vmatpush.bf16.msra.mxu0 0
    %484 = vmatpush.bf16.msra.mxu0 0
    %485 = vmatpush.bf16.msra.mxu0 %v476
    %486 = vmatmul.bf16.gmra.mxu0 %v473
    %v487 = vpop.f32.mrf.mxu0
    %v488 = vadd.f32 0.0, %v487
    %v489 = vpop.f32.mrf.mxu0
    %490 = vdwg.mxu0
    %v491 = vpack.c.bf16 %v488, %v467
    %v493 = vsel %vm114, %v491, 0
    %v496 = vsel %vm187, %v105, 0
    %498 = vmatpush.bf16.msra.mxu0 0
    %499 = vmatpush.bf16.msra.mxu0 0
    %500 = vmatpush.bf16.msra.mxu0 0
    %501 = vmatpush.bf16.msra.mxu0 0
    %502 = vmatpush.bf16.msra.mxu0 0
    %503 = vmatpush.bf16.msra.mxu0 0
    %504 = vmatpush.bf16.msra.mxu0 0
    %505 = vmatpush.bf16.msra.mxu0 %v496
    %506 = vmatmul.bf16.gmra.mxu0 %v493
    %v507 = vpop.f32.mrf.mxu0
    %v508 = vadd.f32 0.0, %v507
    %v509 = vpop.f32.mrf.mxu0
    %v510 = vadd.f32 0.0, %v509
    %511 = vdwg.mxu0
    %v512 = vadd.f32 %v375, %v508
    %v513 = vadd.f32 %v377, %v510
    %514 = vrot.lane.b32.xlu0 %v111, 104
    %v515 = vpop.permute.xlu0 %514
    %516 = vrot.lane.b32.xlu0 %v111, 72
    %v517 = vpop.permute.xlu0 %516
    %v519 = vsel %vm114, %v515, 0
    %v522 = vsel %vm114, %v517, 0
    %524 = vmatpush.bf16.xpose.msra.mxu0 0
    %525 = vmatpush.bf16.xpose.msra.mxu0 0
    %526 = vmatpush.bf16.xpose.msra.mxu0 0
    %527 = vmatpush.bf16.xpose.msra.mxu0 0
    %528 = vmatpush.bf16.xpose.msra.mxu0 0
    %529 = vmatpush.bf16.xpose.msra.mxu0 0
    %530 = vmatpush.bf16.xpose.msra.mxu0 0
    %531 = vmatpush.bf16.xpose.msra.mxu0 %v522
    %532 = vmatmul.bf16.gmra.mxu0 %v519
    %v533 = vpop.f32.mrf.mxu0
    %v534 = vadd.f32 0.0, %v533
    %v535 = vpop.f32.mrf.mxu0
    %536 = vdwg.mxu0
    %537 = vrot.lane.b32.xlu0 %v136, 104
    %v538 = vpop.permute.xlu0 %537
    %539 = vrot.lane.b32.xlu0 %v136, 72
    %v540 = vpop.permute.xlu0 %539
    %v542 = vsel %vm114, %v538, 0
    %v545 = vsel %vm114, %v540, 0
    %547 = vmatpush.bf16.xpose.msra.mxu0 0
    %548 = vmatpush.bf16.xpose.msra.mxu0 0
    %549 = vmatpush.bf16.xpose.msra.mxu0 0
    %550 = vmatpush.bf16.xpose.msra.mxu0 0
    %551 = vmatpush.bf16.xpose.msra.mxu0 0
    %552 = vmatpush.bf16.xpose.msra.mxu0 0
    %553 = vmatpush.bf16.xpose.msra.mxu0 0
    %554 = vmatpush.bf16.xpose.msra.mxu0 %v545
    %555 = vmatmul.bf16.gmra.mxu0 %v542
    %v556 = vpop.f32.mrf.mxu0
    %v557 = vadd.f32 0.0, %v556
    %v558 = vpop.f32.mrf.mxu0
    %559 = vdwg.mxu0
    %v560 = vsel %vm114, %v534, -inf
    %561 = vmax.xlane.f32.xlu0 %v560
    %v562 = vpop.xlane.xlu0 %561
    %v563 = vsel %vm114, %v557, -inf
    %564 = vmax.xlane.f32.xlu0 %v563
    %v565 = vpop.xlane.xlu0 %564
    %v566 = vsub.f32 %v534, %v562
    %v567 = vsub.f32 %v557, %v565
    %v568 = vmul.f32 %v566, 1.442695
    %v569 = vpow.pop %v568
    %v570 = vmul.f32 %v567, 1.442695
    %v571 = vpow.pop %v570
    %v572 = vsel %vm114, %v569, 0.0
    %573 = vadd.xlane.f32.xlu0 %v572
    %v574 = vpop.xlane.xlu0 %573
    %v575 = vsel %vm114, %v571, 0.0
    %576 = vadd.xlane.f32.xlu0 %v575
    %v577 = vpop.xlane.xlu0 %576
    %v578 = vrcp.pop %v574
    %v579 = vrcp.pop %v577
    %v580 = vmul.f32 %v569, %v578
    %v581 = vmul.f32 %v571, %v579
    %v582 = vpack.c.bf16 %v580, %v580
    %v583 = vpack.c.bf16 %v581, %v581
    %584 = vrot.lane.b32.xlu0 %v111, 40
    %v585 = vpop.permute.xlu0 %584
    %v587 = vsel %vm114, %v582, 0
    %v590 = vsel %vm187, %v585, 0
    %592 = vmatpush.bf16.msra.mxu0 0
    %593 = vmatpush.bf16.msra.mxu0 0
    %594 = vmatpush.bf16.msra.mxu0 0
    %595 = vmatpush.bf16.msra.mxu0 0
    %596 = vmatpush.bf16.msra.mxu0 0
    %597 = vmatpush.bf16.msra.mxu0 0
    %598 = vmatpush.bf16.msra.mxu0 0
    %599 = vmatpush.bf16.msra.mxu0 %v590
    %600 = vmatmul.bf16.gmra.mxu0 %v587
    %v601 = vpop.f32.mrf.mxu0
    %v602 = vadd.f32 0.0, %v601
    %v603 = vpop.f32.mrf.mxu0
    %604 = vdwg.mxu0
    %605 = vrot.lane.b32.xlu0 %v136, 40
    %v606 = vpop.permute.xlu0 %605
    %v608 = vsel %vm114, %v583, 0
    %v611 = vsel %vm187, %v606, 0
    %613 = vmatpush.bf16.msra.mxu0 0
    %614 = vmatpush.bf16.msra.mxu0 0
    %615 = vmatpush.bf16.msra.mxu0 0
    %616 = vmatpush.bf16.msra.mxu0 0
    %617 = vmatpush.bf16.msra.mxu0 0
    %618 = vmatpush.bf16.msra.mxu0 0
    %619 = vmatpush.bf16.msra.mxu0 0
    %620 = vmatpush.bf16.msra.mxu0 %v611
    %621 = vmatmul.bf16.gmra.mxu0 %v608
    %v622 = vpop.f32.mrf.mxu0
    %v623 = vadd.f32 0.0, %v622
    %v624 = vpop.f32.mrf.mxu0
    %625 = vdwg.mxu0
    %v626 = vpack.c.bf16 %v623, %v602
    %v628 = vsel %vm114, %v626, 0
    %v631 = vsel %vm187, %v106, 0
    %633 = vmatpush.bf16.msra.mxu0 0
    %634 = vmatpush.bf16.msra.mxu0 0
    %635 = vmatpush.bf16.msra.mxu0 0
    %636 = vmatpush.bf16.msra.mxu0 0
    %637 = vmatpush.bf16.msra.mxu0 0
    %638 = vmatpush.bf16.msra.mxu0 0
    %639 = vmatpush.bf16.msra.mxu0 0
    %640 = vmatpush.bf16.msra.mxu0 %v631
    %641 = vmatmul.bf16.gmra.mxu0 %v628
    %v642 = vpop.f32.mrf.mxu0
    %v643 = vadd.f32 0.0, %v642
    %v644 = vpop.f32.mrf.mxu0
    %v645 = vadd.f32 0.0, %v644
    %646 = vdwg.mxu0
    %v647 = vadd.f32 %v512, %v643
    %v648 = vadd.f32 %v513, %v645
    %v649 = vld [vmem:[%s4] sm:$0x1]
    %v651 = vperm.slane %v649, 0
    %v653 = vadd.f32 %v647, %v651
    %v654 = vadd.f32 %v648, %v651
    %v655 = vadd.f32 %v62, %v653
    %v656 = vadd.f32 %v63, %v654
    %v657 = vld [vmem:[%s5] sm:$0x1]
    %v658 = vld [vmem:[%s6] sm:$0x1]
    %v659 = vsel %vm85, %v655, 0.0
    %660 = vadd.xlane.f32.xlu0 %v659
    %v661 = vpop.xlane.xlu0 %660
    %v662 = vsel %vm85, %v656, 0.0
    %663 = vadd.xlane.f32.xlu0 %v662
    %v664 = vpop.xlane.xlu0 %663
    %v665 = vrcp.pop 32.0
    %v666 = vmul.f32 32.0, %v665
    %v667 = vsub.f32 1.0, %v666
    %v668 = vmul.f32 %v665, %v667
    %v669 = vadd.f32 %v665, %v668
    %vm670 = vweird.f32 %v665
    %v671 = vsel %vm670, %v665, %v669
    %v672 = vmul.f32 %v661, %v671
    %v673 = vmul.f32 %v664, %v671
    %v674 = vsub.f32 %v655, %v672
    %v675 = vsub.f32 %v656, %v673
    %v676 = vmul.f32 %v674, %v674
    %v677 = vmul.f32 %v675, %v675
    %v678 = vsel %vm85, %v676, 0.0
    %679 = vadd.xlane.f32.xlu0 %v678
    %v680 = vpop.xlane.xlu0 %679
    %v681 = vsel %vm85, %v677, 0.0
    %682 = vadd.xlane.f32.xlu0 %v681
    %v683 = vpop.xlane.xlu0 %682
    %v684 = vmul.f32 %v680, %v671
    %v685 = vmul.f32 %v683, %v671
    %v686 = vadd.f32 %v684, 1e-05
    %v687 = vadd.f32 %v685, 1e-05
    %v688 = vrsqrt.pop %v686
    %v689 = vmul.f32 %v688, %v686
    %v690 = vmul.f32 %v689, %v688
    %v691 = vmul.f32 0.5, %v690
    %v692 = vsub.f32 1.5, %v691
    %v693 = vmul.f32 %v688, %v692
    %vm694 = vweird.f32 %v686
    %vm695 = vweird.f32 %v688
    %vm696 = vmor %vm694, %vm695
    %v697 = vsel %vm696, %v688, %v693
    %v698 = vrsqrt.pop %v687
    %v699 = vmul.f32 %v698, %v687
    %v700 = vmul.f32 %v699, %v698
    %v701 = vmul.f32 0.5, %v700
    %v702 = vsub.f32 1.5, %v701
    %v703 = vmul.f32 %v698, %v702
    %vm704 = vweird.f32 %v687
    %vm705 = vweird.f32 %v698
    %vm706 = vmor %vm704, %vm705
    %v707 = vsel %vm706, %v698, %v703
    %v708 = vmul.f32 %v674, %v697
    %v709 = vmul.f32 %v675, %v707
    %v711 = vperm.slane %v657, 0
    %v713 = vmul.f32 %v708, %v711
    %v714 = vmul.f32 %v709, %v711
    %v716 = vperm.slane %v658, 0
    %v718 = vadd.f32 %v713, %v716
    %v719 = vadd.f32 %v714, %v716
    %v720 = vpack.c.bf16 %v719, %v718
    %v721 = vld [vmem:[#allocation2] sm:$0xf]
    %v722 = vld [vmem:[#allocation2 + $0x4] sm:$0xf]
    %v723 = vld [vmem:[#allocation2 + $0x8] sm:$0xf]
    %v724 = vld [vmem:[#allocation2 + $0xc] sm:$0xf]
    %v725 = vld [vmem:[%s8] sm:$0x1]
    %v727 = vperm.slane %v725, 0
    %v733 = vunpack.c.l.b16 %v721
    %v734 = vunpack.c.l.b16 %v722
    %v735 = vunpack.c.l.b16 %v723
    %v736 = vunpack.c.l.b16 %v724
    %v737 = vpack.c.b16 %v734, %v733
    %v738 = vpack.c.b16 %v736, %v735
    %v742 = vsel %vm85, %v720, 0
    %744 = vmatpush.bf16.msra.mxu0 0
    %745 = vmatpush.bf16.msra.mxu0 0
    %746 = vmatpush.bf16.msra.mxu0 0
    %747 = vmatpush.bf16.msra.mxu0 0
    %748 = vmatpush.bf16.msra.mxu0 0
    %749 = vmatpush.bf16.msra.mxu0 0
    %750 = vmatpush.bf16.msra.mxu0 %v738
    %751 = vmatpush.bf16.msra.mxu0 %v737
    %752 = vmatmul.bf16.gmra.mxu0 %v742
    %v753 = vpop.f32.mrf.mxu0
    %v754 = vadd.f32 %v727, %v753
    %v755 = vpop.f32.mrf.mxu0
    %v756 = vadd.f32 %v727, %v755
    %757 = vdwg.mxu0
    %v758 = vmax.f32 %v754, 0.0
    %v759 = vmax.f32 %v756, 0.0
    %v760 = vpack.c.bf16 %v759, %v758
    %v761 = vld [vmem:[%s9] sm:$0xf]
    %v762 = vld [vmem:[%s9 + $0x4] sm:$0xf]
    %v763 = vld [vmem:[%s9 + $0x8] sm:$0xf]
    %v764 = vld [vmem:[%s9 + $0xc] sm:$0xf]
    %v765 = vld [vmem:[%s9 + $0x10] sm:$0xf]
    %v766 = vld [vmem:[%s9 + $0x14] sm:$0xf]
    %v767 = vld [vmem:[%s9 + $0x18] sm:$0xf]
    %v768 = vld [vmem:[%s9 + $0x1c] sm:$0xf]
    %v769 = vld [vmem:[%s10] sm:$0x1]
    %v771 = vperm.slane %v769, 0
    %v781 = vunpack.c.l.b16 %v761
    %v782 = vunpack.c.l.b16 %v762
    %v783 = vunpack.c.l.b16 %v763
    %v784 = vunpack.c.l.b16 %v764
    %v785 = vunpack.c.l.b16 %v765
    %v786 = vunpack.c.l.b16 %v766
    %v787 = vunpack.c.l.b16 %v767
    %v788 = vunpack.c.l.b16 %v768
    %v789 = vpack.c.b16 %v782, %v781
    %v790 = vpack.c.b16 %v784, %v783
    %v791 = vpack.c.b16 %v786, %v785
    %v792 = vpack.c.b16 %v788, %v787
    %vm797 = vcmask 523264
    %v799 = vsel %vm797, %v760, 0
    %801 = vmatpush.bf16.msra.mxu0 0
    %802 = vmatpush.bf16.msra.mxu0 0
    %803 = vmatpush.bf16.msra.mxu0 0
    %804 = vmatpush.bf16.msra.mxu0 0
    %805 = vmatpush.bf16.msra.mxu0 %v792
    %806 = vmatpush.bf16.msra.mxu0 %v791
    %807 = vmatpush.bf16.msra.mxu0 %v790
    %808 = vmatpush.bf16.msra.mxu0 %v789
    %809 = vmatmul.bf16.gmra.mxu0 %v799
    %v810 = vpop.f32.mrf.mxu0
    %v811 = vadd.f32 %v771, %v810
    %v812 = vpop.f32.mrf.mxu0
    %v813 = vadd.f32 %v771, %v812
    %814 = vdwg.mxu0
    %v815 = vadd.f32 %v718, %v811
    %v816 = vadd.f32 %v719, %v813
    %v817 = vld [vmem:[%s11] sm:$0x1]
    %v818 = vld [vmem:[%s12] sm:$0x1]
    %v819 = vsel %vm85, %v815, 0.0
    %820 = vadd.xlane.f32.xlu0 %v819
    %v821 = vpop.xlane.xlu0 %820
    %v822 = vsel %vm85, %v816, 0.0
    %823 = vadd.xlane.f32.xlu0 %v822
    %v824 = vpop.xlane.xlu0 %823
    %v825 = vmul.f32 %v821, %v671
    %v826 = vmul.f32 %v824, %v671
    %v827 = vsub.f32 %v815, %v825
    %v828 = vsub.f32 %v816, %v826
    %v829 = vmul.f32 %v827, %v827
    %v830 = vmul.f32 %v828, %v828
    %v831 = vsel %vm85, %v829, 0.0
    %832 = vadd.xlane.f32.xlu0 %v831
    %v833 = vpop.xlane.xlu0 %832
    %v834 = vsel %vm85, %v830, 0.0
    %835 = vadd.xlane.f32.xlu0 %v834
    %v836 = vpop.xlane.xlu0 %835
    %v837 = vmul.f32 %v833, %v671
    %v838 = vmul.f32 %v836, %v671
    %v839 = vadd.f32 %v837, 1e-05
    %v840 = vadd.f32 %v838, 1e-05
    %v841 = vrsqrt.pop %v839
    %v842 = vmul.f32 %v841, %v839
    %v843 = vmul.f32 %v842, %v841
    %v844 = vmul.f32 0.5, %v843
    %v845 = vsub.f32 1.5, %v844
    %v846 = vmul.f32 %v841, %v845
    %vm847 = vweird.f32 %v839
    %vm848 = vweird.f32 %v841
    %vm849 = vmor %vm847, %vm848
    %v850 = vsel %vm849, %v841, %v846
    %v851 = vrsqrt.pop %v840
    %v852 = vmul.f32 %v851, %v840
    %v853 = vmul.f32 %v852, %v851
    %v854 = vmul.f32 0.5, %v853
    %v855 = vsub.f32 1.5, %v854
    %v856 = vmul.f32 %v851, %v855
    %vm857 = vweird.f32 %v840
    %vm858 = vweird.f32 %v851
    %vm859 = vmor %vm857, %vm858
    %v860 = vsel %vm859, %v851, %v856
    %v861 = vmul.f32 %v827, %v850
    %v862 = vmul.f32 %v828, %v860
    %v864 = vperm.slane %v817, 0
    %v866 = vmul.f32 %v861, %v864
    %v867 = vmul.f32 %v862, %v864
    %v869 = vperm.slane %v818, 0
    %v871 = vadd.f32 %v866, %v869
    %v872 = vadd.f32 %v867, %v869
    %873 = vst.msk [vmem:[#allocation5] sm:$0xff] %vm85, %v871
    %874 = vst.msk [vmem:[#allocation5 + $0x8] sm:$0xff] %vm85, %v872
    // Predicated region
    $region58: #{tpu_custom_call.1} parent=1 // pred_check
      _
    $region59: #{tpu_custom_call.1} parent=1 // pred_check_branch
      %876 = sbr.rel (0) target = $region61
    $region60: #{tpu_custom_call.1} parent=1 // pred_region
      %878 = vsyncadd [#allocation4], 0
      %s879 = sshll.u32 [#allocation5], 4
      %s880 = int_to_ptr.vmem [resolvable:$true] %s879
      %s881 = sshll.u32 %s13, 4
      %s882 = int_to_ptr.hbm [resolvable:$true] %s881
      %887 = dma.vmem_to_hbm [thread:$0]  %s880, 256, %s882, [#allocation4], 128, 128, 8
    $region61: #{tpu_custom_call.1} parent=1 // pred_fallthru
      _
    // Predicated region
    $region62: #{tpu_custom_call.1} parent=1 // pred_check
      _
    $region63: #{tpu_custom_call.1} parent=1 // pred_check_branch
      %889 = sbr.rel (0) target = $region65
    $region64: #{tpu_custom_call.1} parent=1 // pred_region
      %891 = dma.done [#allocation4], 256
    $region65: #{tpu_custom_call.1} parent=1 // pred_fallthru
      _
    %892 = vsyncpa [#allocation3], 1
    %893 = vsyncpa [#allocation4], 1

</llo_original>
